<compile_context>
chip_gen: v7x
topology: tpu7x:2x2x1
jax: 0.10.0
libtpu: 0.0.40
codegen_flags: <defaults>
</compile_context>

<pallas_src>
import jax
import jax.numpy as jnp
from jax.experimental import pallas as pl
from jax.experimental.pallas import tpu as pltpu


# --------------------------------------------------------------------------- #
# Helpers
# --------------------------------------------------------------------------- #
def _round_up(a: int, b: int) -> int:
    return (a + b - 1) // b * b


def _sublane(dtype) -> int:
    # Native sublane tile: 8 for f32, 16 for bf16, 32 for int8/fp8.
    return max(8, 32 // jnp.dtype(dtype).itemsize)


def _vmem_capacity_bytes() -> int:
    try:
        return int(pltpu.get_tpu_info().vmem_capacity_bytes)
    except Exception:
        return 64 * 1024 * 1024          # conservative (v7x-sized) fallback


def _vmem_need_bytes(tm, tk, d_pad, csize) -> int:
    # Double-buffered pipelined operands + resident accumulator + f32 temps.
    return (2 * tm * d_pad * csize         # x tile
            + 2 * tm * d_pad * 4           # output tile (f32 worst case)
            + tm * d_pad * 4               # f32 accumulator scratch
            + 2 * d_pad * 2 * tk * csize   # fused [w1^T | w3^T] chunk
            + 2 * tk * d_pad * csize       # w2^T chunk
            + 2 * tm * 2 * tk * 4)         # h / gated f32 intermediates


def _plan(d_model, hidden, compute_dtype, *, tm=None, tk_h=None,
          vmem_limit_bytes=None):
    """Generation-aware tile / VMEM-budget choice (shape + dtype, not M)."""
    cdt = jnp.dtype(compute_dtype)
    csize = cdt.itemsize
    sub = _sublane(cdt)

    cap = _vmem_capacity_bytes()
    small_vmem = cap <= 80 * 1024 * 1024           # v7x-class part (64 MiB / TC)
    if vmem_limit_bytes is None:
        vmem_limit_bytes = int(cap * 0.80)         # headroom for compiler scratch
    if tm is None:
        # Weights re-stream from HBM once per row tile -> arithmetic intensity
        # scales with tm.  Bigger on 128 MiB parts, tighter on v7x.
        tm = 512 if small_vmem else 1024
    if tk_h is None:
        tk_h = 256 if small_vmem else 512

    d_pad = _round_up(d_model, 256) if d_model >= 256 else _round_up(d_model, 128)
    tm = _round_up(tm, sub)
    tk = _round_up(min(tk_h, _round_up(hidden, 128)), 128)

    # Safety net: shrink tiles until the estimated working set fits the budget.
    while _vmem_need_bytes(tm, tk, d_pad, csize) > vmem_limit_bytes and tm > 2 * sub:
        tm //= 2
    while _vmem_need_bytes(tm, tk, d_pad, csize) > vmem_limit_bytes and tk > 128:
        tk //= 2

    h_pad = _round_up(hidden, tk)
    return dict(d_pad=d_pad, h_pad=h_pad, tm=tm, tk=tk,
                vmem_limit_bytes=vmem_limit_bytes, compute_dtype=cdt)


# --------------------------------------------------------------------------- #
# Kernel
# --------------------------------------------------------------------------- #
def swiglu_kernel(x_ref, w13_ref, w2t_ref, o_ref, acc_ref):
    # x_ref:   (tm, Dp)       activation rows for this tile (compute dtype)
    # w13_ref: (Dp, 2*tk)     [w1^T chunk k | w3^T chunk k]
    # w2t_ref: (tk, Dp)       w2^T chunk k
    # o_ref:   (tm, Dp)       output row tile (split dim squeezed away)
    # acc_ref: (tm, Dp) f32   down-projection accumulator (resident across k)
    k = pl.program_id(2)

    @pl.when(k == 0)
    def _init():
        acc_ref[...] = jnp.zeros_like(acc_ref)

    tk = w2t_ref.shape[0]

    # Fused up-projection: one MXU matmul producing [h1 | h3] in f32.
    h = jnp.dot(x_ref[...], w13_ref[...], preferred_element_type=jnp.float32)
    h1 = h[:, :tk]
    h3 = h[:, tk:]

    # SiLU gate in f32 (EUP sigmoid + VPU muls).
    gated = (h1 * jax.nn.sigmoid(h1)) * h3

    # Down-projection of this hidden chunk, accumulated in f32.
    acc_ref[...] += jnp.dot(gated.astype(w2t_ref.dtype), w2t_ref[...],
                            preferred_element_type=jnp.float32)

    @pl.when(k == pl.num_programs(2) - 1)
    def _store():
        o_ref[...] = acc_ref[...].astype(o_ref.dtype)


# --------------------------------------------------------------------------- #
# Wrapper
# --------------------------------------------------------------------------- #
def pack_swiglu_weights(w1, w2, w3, plan):
    """One-time layout plumbing.  Do this at init, NOT per forward call."""
    hidden, d_model = w1.shape
    cdt = plan["compute_dtype"]
    d_pad, h_pad, tk = plan["d_pad"], plan["h_pad"], plan["tk"]
    nk = h_pad // tk
    w1t = jnp.zeros((d_pad, h_pad), cdt).at[:d_model, :hidden].set(w1.T.astype(cdt))
    w3t = jnp.zeros((d_pad, h_pad), cdt).at[:d_model, :hidden].set(w3.T.astype(cdt))
    w2t = jnp.zeros((h_pad, d_pad), cdt).at[:hidden, :d_model].set(w2.T.astype(cdt))
    # Interleave per hidden chunk: column block k (width 2*tk) = [w1^T_k | w3^T_k].
    w13 = jnp.concatenate(
        [w1t.reshape(d_pad, nk, tk), w3t.reshape(d_pad, nk, tk)], axis=2,
    ).reshape(d_pad, nk * 2 * tk)
    return w13, w2t


def swiglu_forward(x, w13, w2t, d_model, hidden, plan):
    orig_shape = x.shape
    x2d = x.reshape(-1, d_model)
    M = x2d.shape[0]

    cdt = plan["compute_dtype"]
    d_pad, h_pad, tk = plan["d_pad"], plan["h_pad"], plan["tk"]
    nk = h_pad // tk
    sub = _sublane(cdt)

    tm = min(plan["tm"], _round_up(M, sub))        # native sublane multiple
    m_pad = _round_up(M, tm)
    n_row = m_pad // tm

    # v7x megacore: a single row tile (decode-sized M) would leave the second
    # TensorCore idle -> split the hidden reduction into 2 parallel groups and
    # sum the f32 partials in the wrapper.  Harmless on single-TC parts.
    n_split = 2 if (n_row == 1 and nk >= 2 and nk % 2 == 0) else 1
    nk_g = nk // n_split

    if m_pad == M and d_pad == d_model and x2d.dtype == cdt:
        xp = x2d
    else:
        xp = jnp.zeros((m_pad, d_pad), cdt).at[:M, :d_model].set(x2d.astype(cdt))

    out_dtype = x.dtype if n_split == 1 else jnp.float32
    csize = cdt.itemsize
    cost = pl.CostEstimate(
        flops=6 * m_pad * d_pad * h_pad,             # 2 up-proj + 1 down-proj GEMMs
        transcendentals=m_pad * h_pad,               # sigmoid
        bytes_accessed=int(m_pad * d_pad * csize                       # x read
                           + n_row * (w13.size + w2t.size) * csize     # weights per row tile
                           + n_split * m_pad * d_pad
                           * jnp.dtype(out_dtype).itemsize),           # out write
    )

    out_pad = pl.pallas_call(
        swiglu_kernel,
        out_shape=jax.ShapeDtypeStruct((n_split, m_pad, d_pad), out_dtype),
        grid_spec=pltpu.PrefetchScalarGridSpec(
            num_scalar_prefetch=0,
            grid=(n_split, n_row, nk_g),
            in_specs=[
                pl.BlockSpec((tm, d_pad), lambda s, i, k: (i, 0)),                 # x rows
                pl.BlockSpec((d_pad, 2 * tk), lambda s, i, k: (0, s * nk_g + k)),  # [w1|w3]_k
                pl.BlockSpec((tk, d_pad), lambda s, i, k: (s * nk_g + k, 0)),      # w2^T_k
            ],
            out_specs=pl.BlockSpec((None, tm, d_pad), lambda s, i, k: (s, i, 0)),
            scratch_shapes=[pltpu.VMEM((tm, d_pad), jnp.float32)],
        ),
        compiler_params=pltpu.CompilerParams(
            dimension_semantics=("parallel", "parallel", "arbitrary"),
            vmem_limit_bytes=plan["vmem_limit_bytes"],
        ),
        cost_estimate=cost,
    )(xp, w13, w2t)

    out2d = out_pad[0] if n_split == 1 else jnp.sum(out_pad, axis=0)
    return out2d[:M, :d_model].astype(x.dtype).reshape(orig_shape)


def make_swiglu(w1, w2, w3, *, compute_dtype=None, tm=None, tk_h=None,
                vmem_limit_bytes=None):
    """Pre-pack the weights ONCE and return `forward(x)`.

    w1, w3: (hidden, d_model)  (PyTorch layout);  w2: (d_model, hidden).
    compute_dtype: MXU operand dtype.  f32 weights default to bf16 operands
      (deliberate precision/perf tradeoff); gating + accumulation are f32.
    """
    hidden, d_model = w1.shape
    if compute_dtype is None:
        compute_dtype = (jnp.bfloat16
                         if jnp.dtype(w1.dtype) == jnp.dtype(jnp.float32)
                         else w1.dtype)
    plan = _plan(d_model, hidden, compute_dtype, tm=tm, tk_h=tk_h,
                 vmem_limit_bytes=vmem_limit_bytes)
    w13, w2t = pack_swiglu_weights(w1, w2, w3, plan)

    def forward(x):
        return swiglu_forward(x, w13, w2t, d_model, hidden, plan)

    return forward


def swiglu(x, w1, w2, w3, **kwargs):
    """One-shot convenience wrapper (re-packs weights every call).
    For repeated calls (training / decode), use `make_swiglu` once at init."""
    return make_swiglu(w1, w2, w3, **kwargs)(x)


# --------------------------------------------------------------------------- #
# Reference (mirrors the kernel's compute-dtype casts)
# --------------------------------------------------------------------------- #
def swiglu_ref(x, w1, w2, w3, compute_dtype=None):
    cd = jnp.dtype(compute_dtype) if compute_dtype is not None else x.dtype
    xc, w1c, w2c, w3c = (a.astype(cd) for a in (x, w1, w2, w3))
    h1 = jnp.einsum('hd,...d->...h', w1c, xc, preferred_element_type=jnp.float32)
    h3 = jnp.einsum('hd,...d->...h', w3c, xc, preferred_element_type=jnp.float32)
    gated = (jax.nn.sigmoid(h1) * h1) * h3
    out = jnp.einsum('...h,dh->...d', gated.astype(cd), w2c,
                     preferred_element_type=jnp.float32)
    return out.astype(x.dtype)


# --------------------------------------------------------------------------- #
# Self-test
# --------------------------------------------------------------------------- #
if __name__ == "__main__":
    # ---- Test 1: module-like small shapes ---------------------------------
    batch, seq, d_model, hidden = 2, 8, 32, 64
    key = jax.random.PRNGKey(0)
    kx, k1, k2, k3 = jax.random.split(key, 4)

    x = jax.random.normal(kx, (batch, seq, d_model), dtype=jnp.float32)
    w1 = jax.random.normal(k1, (hidden, d_model), jnp.float32) * d_model ** -0.5
    w2 = jax.random.normal(k2, (d_model, hidden), jnp.float32) * hidden ** -0.5
    w3 = jax.random.normal(k3, (hidden, d_model), jnp.float32) * d_model ** -0.5

    fwd = jax.jit(make_swiglu(w1, w2, w3))          # weights packed ONCE here
    out = jax.block_until_ready(fwd(x))
    ref = swiglu_ref(x, w1, w2, w3, compute_dtype=jnp.bfloat16)
    assert out.shape == x.shape
    assert jnp.allclose(out, ref, atol=1e-2, rtol=1e-2), "mismatch vs reference (test 1)"

    # ---- Test 2: decode-sized M, several hidden chunks --------------------
    # Exercises the parallel hidden split (n_split=2) + k-accumulation path.
    d2, h2 = 128, 512
    kx2, k4, k5, k6 = jax.random.split(jax.random.PRNGKey(1), 4)
    x2 = jax.random.normal(kx2, (1, 4, d2), jnp.float32)
    w1b = jax.random.normal(k4, (h2, d2), jnp.float32) * d2 ** -0.5
    w2b = jax.random.normal(k5, (d2, h2), jnp.float32) * h2 ** -0.5
    w3b = jax.random.normal(k6, (h2, d2), jnp.float32) * d2 ** -0.5

    fwd2 = jax.jit(make_swiglu(w1b, w2b, w3b, tk_h=128))
    out2 = jax.block_until_ready(fwd2(x2))
    ref2 = swiglu_ref(x2, w1b, w2b, w3b, compute_dtype=jnp.bfloat16)
    assert out2.shape == x2.shape
    assert jnp.allclose(out2, ref2, atol=1e-2, rtol=1e-2), "mismatch vs reference (test 2)"

    print("KERNEL_OK")
</pallas_src>

<mosaic_0001>
module attributes {stable_mosaic.version = 11 : i64} {
  func.func @swiglu_kernel(%arg0: i32, %arg1: i32, %arg2: i32, %arg3: memref<16x128xbf16, #tpu.memory_space<vmem>>, %arg4: memref<128x256xbf16, #tpu.memory_space<vmem>>, %arg5: memref<128x128xbf16, #tpu.memory_space<vmem>>, %arg6: memref<1x16x128xf32, #tpu.memory_space<vmem>>, %arg7: memref<16x128xf32, #tpu.memory_space<vmem>>) attributes {dimension_semantics = [#tpu.dimension_semantics<parallel>, #tpu.dimension_semantics<parallel>, #tpu.dimension_semantics<arbitrary>], iteration_bounds = array<i64: 1, 1, 1>, scalar_prefetch = 0 : i64, scratch_operands = 1 : i64, tpu.core_type = #tpu.core_type<tc>, window_params = [{transform_indices = @transform_0, window_bounds = array<i64: 16, 128>}, {transform_indices = @transform_1, window_bounds = array<i64: 128, 256>}, {transform_indices = @transform_2, window_bounds = array<i64: 128, 128>}, {transform_indices = @transform_3, window_bounds = array<i64: 1, 16, 128>}]} {
    %c0_i32 = arith.constant 0 : i32
    %0 = arith.cmpi eq, %arg2, %c0_i32 : i32
    %1 = arith.extui %0 : i1 to i32
    %c0_i32_0 = arith.constant 0 : i32
    %2 = arith.cmpi ne, %1, %c0_i32_0 : i32
    scf.if %2 {
      %cst_14 = arith.constant 0.000000e+00 : f32
      %24 = vector.broadcast %cst_14 : f32 to vector<16x128xf32>
      %c0_15 = arith.constant 0 : index
      %c0_16 = arith.constant 0 : index
      %25 = vector.load %arg7[%c0_15, %c0_16] : memref<16x128xf32, #tpu.memory_space<vmem>>, vector<16x128xf32>
      tpu.vector_store %arg7[%c0_15, %c0_16], %24 {strides = array<i32>} : memref<16x128xf32, #tpu.memory_space<vmem>>, vector<16x128xf32>,
    } else {
    }
    %c0 = arith.constant 0 : index
    %c0_1 = arith.constant 0 : index
    %3 = vector.load %arg3[%c0, %c0_1] : memref<16x128xbf16, #tpu.memory_space<vmem>>, vector<16x128xbf16>
    %c0_2 = arith.constant 0 : index
    %c0_3 = arith.constant 0 : index
    %4 = vector.load %arg4[%c0_2, %c0_3] : memref<128x256xbf16, #tpu.memory_space<vmem>>, vector<128x256xbf16>
    %cst = arith.constant dense<0.000000e+00> : vector<16x256xf32>
    %5 = tpu.matmul %3, %4, %cst {dimension_numbers = #tpu.dot_dimension_numbers<[1], [0], [0], [1], [0, 0, 1, 1], [], []>} : vector<16x128xbf16>, vector<128x256xbf16>, vector<16x256xf32> -> vector<16x256xf32>
    %6 = vector.extract_strided_slice %5 {offsets = [0, 0], sizes = [16, 128], strides = [1, 1]} : vector<16x256xf32> to vector<16x128xf32>
    %7 = vector.extract_strided_slice %5 {offsets = [0, 128], sizes = [16, 128], strides = [1, 1]} : vector<16x256xf32> to vector<16x128xf32>
    %8 = arith.negf %6 : vector<16x128xf32>
    %9 = math.exp %8 : vector<16x128xf32>
    %cst_4 = arith.constant 1.000000e+00 : f32
    %10 = vector.broadcast %cst_4 : f32 to vector<16x128xf32>
    %11 = arith.addf %10, %9 : vector<16x128xf32>
    %12 = arith.divf %10, %11 : vector<16x128xf32>
    %13 = arith.mulf %6, %12 : vector<16x128xf32>
    %14 = arith.mulf %13, %7 : vector<16x128xf32>
    %c0_5 = arith.constant 0 : index
    %c0_6 = arith.constant 0 : index
    %15 = vector.load %arg7[%c0_5, %c0_6] : memref<16x128xf32, #tpu.memory_space<vmem>>, vector<16x128xf32>
    %16 = arith.truncf %14 : vector<16x128xf32> to vector<16x128xbf16>
    %c0_7 = arith.constant 0 : index
    %c0_8 = arith.constant 0 : index
    %17 = vector.load %arg5[%c0_7, %c0_8] : memref<128x128xbf16, #tpu.memory_space<vmem>>, vector<128x128xbf16>
    %cst_9 = arith.constant dense<0.000000e+00> : vector<16x128xf32>
    %18 = tpu.matmul %16, %17, %cst_9 {dimension_numbers = #tpu.dot_dimension_numbers<[1], [0], [0], [1], [0, 0, 1, 1], [], []>} : vector<16x128xbf16>, vector<128x128xbf16>, vector<16x128xf32> -> vector<16x128xf32>
    %19 = arith.addf %15, %18 : vector<16x128xf32>
    %c0_10 = arith.constant 0 : index
    %c0_11 = arith.constant 0 : index
    %20 = vector.load %arg7[%c0_10, %c0_11] : memref<16x128xf32, #tpu.memory_space<vmem>>, vector<16x128xf32>
    tpu.vector_store %arg7[%c0_10, %c0_11], %19 {strides = array<i32>} : memref<16x128xf32, #tpu.memory_space<vmem>>, vector<16x128xf32>,
    %c0_i32_12 = arith.constant 0 : i32
    %21 = arith.cmpi eq, %arg2, %c0_i32_12 : i32
    %22 = arith.extui %21 : i1 to i32
    %c0_i32_13 = arith.constant 0 : i32
    %23 = arith.cmpi ne, %22, %c0_i32_13 : i32
    scf.if %23 {
      %c0_14 = arith.constant 0 : index
      %c0_15 = arith.constant 0 : index
      %24 = vector.load %arg7[%c0_14, %c0_15] : memref<16x128xf32, #tpu.memory_space<vmem>>, vector<16x128xf32>
      %c0_16 = arith.constant 0 : index
      %c0_17 = arith.constant 0 : index
      %c0_18 = arith.constant 0 : index
      %25 = vector.load %arg6[%c0_16, %c0_17, %c0_18] : memref<1x16x128xf32, #tpu.memory_space<vmem>>, vector<1x16x128xf32>
      %26 = vector.shape_cast %25 : vector<1x16x128xf32> to vector<16x128xf32>
      %27 = vector.shape_cast %24 : vector<16x128xf32> to vector<1x16x128xf32>
      tpu.vector_store %arg6[%c0_16, %c0_17, %c0_18], %27 {strides = array<i32>} : memref<1x16x128xf32, #tpu.memory_space<vmem>>, vector<1x16x128xf32>,
    } else {
    }
    return
  }
  func.func @transform_0(%arg0: i32, %arg1: i32, %arg2: i32) -> (i32, i32) {
    %c0_i32 = arith.constant 0 : i32
    %c0_i32_0 = arith.constant 0 : i32
    return %arg1, %c0_i32 : i32, i32
  }
  func.func @transform_1(%arg0: i32, %arg1: i32, %arg2: i32) -> (i32, i32) {
    %c1_i32 = arith.constant 1 : i32
    %0 = arith.muli %arg0, %c1_i32 : i32
    %1 = arith.addi %0, %arg2 : i32
    %c0_i32 = arith.constant 0 : i32
    %c0_i32_0 = arith.constant 0 : i32
    return %c0_i32, %1 : i32, i32
  }
  func.func @transform_2(%arg0: i32, %arg1: i32, %arg2: i32) -> (i32, i32) {
    %c1_i32 = arith.constant 1 : i32
    %0 = arith.muli %arg0, %c1_i32 : i32
    %1 = arith.addi %0, %arg2 : i32
    %c0_i32 = arith.constant 0 : i32
    %c0_i32_0 = arith.constant 0 : i32
    return %1, %c0_i32 : i32, i32
  }
  func.func @transform_3(%arg0: i32, %arg1: i32, %arg2: i32) -> (i32, i32, i32) {
    %c0_i32 = arith.constant 0 : i32
    %c0_i32_0 = arith.constant 0 : i32
    return %arg0, %arg1, %c0_i32 : i32, i32, i32
  }
}

</mosaic_0001>

<llo_original>
// kernel: forward.1
$region0: #{forward.1}
  #allocation0 [shape = 'u32[]', space=smem, size = 0x4, offset = 0x4, fixed_abs, tag = 'smem constant byte address 0x4 - core index']
  #allocation1 [shape = 'u32[144,128]{1,0:T(1,128)}', space=vmem, size = 0x12000, scoped, tag = 'internal scratch']
  #allocation2 [shape = 'f32[16,128]{1,0:T(8,128)}', space=vmem, size = 0x2000, scoped, tag = 'scratch operand']
  %s0 = inlined_call_operand.vmem [shape: bf16[16,128], index: 0, kind: input, shape index: {}]
  %s1 = inlined_call_operand.vmem [shape: bf16[128,256], index: 1, kind: input, shape index: {}]
  %s2 = inlined_call_operand.vmem [shape: bf16[128,128], index: 2, kind: input, shape index: {}]
  %s3 = inlined_call_operand.vmem [shape: f32[1,16,128], index: 3, kind: output, shape index: {}]
  %s4 = sld [smem:[#allocation0]]
  $region30: #{forward.1} parent=0
    _
  %s6 = ssub.s32 1, %s4
  %s7 = scalar_select 0, %s6, %s4
  // Predicated region
  $region2: #{forward.1} parent=0 // pred_check
    _
  $region3: #{forward.1} parent=0 // pred_check_branch
    %9 = sbr.rel (0) target = $region5
  $region4: #{forward.1} parent=0 // pred_region
    _
  $region5: #{forward.1} parent=0 // pred_fallthru
    _
  // Predicated region
  $region6: #{forward.1} parent=0 // pred_check
    _
  $region7: #{forward.1} parent=0 // pred_check_branch
    %11 = sbr.rel (0) target = $region9
  $region8: #{forward.1} parent=0 // pred_region
    %s12 = sadd.s32 0, 0
    %s13 = smul.u32 2, %s12
    %p14 = scmp.lt.s32.totalorder %s13, 1
    %s15 = scalar_select %p14, %s13, 1
    %s16 = smul.addr %s15, 4
    %s17 = scalar_lea.vmem %s1, %s16
    %s18 = sadd.s32 0, 0
    %s19 = smul.u32 2, %s18
  $region9: #{forward.1} parent=0 // pred_fallthru
    _
  // Predicated region
  $region10: #{forward.1} parent=0 // pred_check
    _
  $region11: #{forward.1} parent=0 // pred_check_branch
    %21 = sbr.rel (0) target = $region13
  $region12: #{forward.1} parent=0 // pred_region
    %s22 = sadd.s32 0, 0
    %s23 = smul.u32 16, %s22
    %p24 = scmp.lt.s32.totalorder %s23, 15
    %s25 = scalar_select %p24, %s23, 15
    %s26 = smul.addr %s25, 4
    %s27 = scalar_lea.vmem %s2, %s26
    %s28 = sadd.s32 0, 0
    %s29 = smul.u32 16, %s28
  $region13: #{forward.1} parent=0 // pred_fallthru
    _
  %s30 = sadd.s32 0, 0
  %s31 = smul.u32 2, %s30
  %p32 = scmp.lt.s32.totalorder %s31, 1
  %s33 = scalar_select %p32, %s31, 1
  %s34 = smul.addr %s33, 4
  %s35 = scalar_lea.vmem %s1, %s34
  %s36 = sadd.s32 0, 0
  %s37 = smul.u32 16, %s36
  %p38 = scmp.lt.s32.totalorder %s37, 15
  %s39 = scalar_select %p38, %s37, 15
  %s40 = smul.addr %s39, 4
  %s41 = scalar_lea.vmem %s2, %s40
  %s42 = sadd.s32 0, 0
  %s43 = smul.u32 2, %s42
  %p44 = scmp.lt.s32.totalorder %s43, 1
  %s45 = scalar_select %p44, %s43, 1
  %s46 = smul.addr %s45, 4
  %s47 = scalar_lea.vmem %s1, %s46
  %s48 = sadd.s32 0, 0
  %s49 = smul.u32 2, %s48
  %s50 = sadd.s32 0, 0
  %s51 = smul.u32 16, %s50
  %p52 = scmp.lt.s32.totalorder %s51, 15
  %s53 = scalar_select %p52, %s51, 15
  %s54 = smul.addr %s53, 4
  %s55 = scalar_lea.vmem %s2, %s54
  %s56 = sadd.s32 0, 0
  %s57 = smul.u32 16, %s56
  %p59 = scmp.eq.s32.totalorder 0, 0
  // Predicated region
  $region14: #{forward.1} parent=0 // pred_check
    %p60 = pneg %p59
  $region15: #{forward.1} parent=0 // pred_check_branch
    %62 = sbr.rel (%p60) target = $region17
  $region16: #{forward.1} parent=0 // pred_region
    %63 = vst [vmem:[#allocation2] sm:$0xff] 0.0
    %64 = vst [vmem:[#allocation2 + $0x8] sm:$0xff] 0.0
  $region17: #{forward.1} parent=0 // pred_fallthru
    _
  %v65 = vld [vmem:[%s0] sm:$0xf]
  %v66 = vld [vmem:[%s0 + $0x4] sm:$0xf]
  %v67 = vld [vmem:[%s47] sm:$0xff]
  %v68 = vld [vmem:[%s47 + $0x8] sm:$0xff]
  %v69 = vld [vmem:[%s47 + $0x10] sm:$0xff]
  %v70 = vld [vmem:[%s47 + $0x18] sm:$0xff]
  %v71 = vld [vmem:[%s47 + $0x20] sm:$0xff]
  %v72 = vld [vmem:[%s47 + $0x28] sm:$0xff]
  %v73 = vld [vmem:[%s47 + $0x30] sm:$0xff]
  %v74 = vld [vmem:[%s47 + $0x38] sm:$0xff]
  %v75 = vld [vmem:[%s47 + $0x40] sm:$0xff]
  %v76 = vld [vmem:[%s47 + $0x48] sm:$0xff]
  %v77 = vld [vmem:[%s47 + $0x50] sm:$0xff]
  %v78 = vld [vmem:[%s47 + $0x58] sm:$0xff]
  %v79 = vld [vmem:[%s47 + $0x60] sm:$0xff]
  %v80 = vld [vmem:[%s47 + $0x68] sm:$0xff]
  %v81 = vld [vmem:[%s47 + $0x70] sm:$0xff]
  %v82 = vld [vmem:[%s47 + $0x78] sm:$0xff]
  %v85 = vunpack.c.l.b16 %v65
  %v86 = vunpack.c.l.b16 %v66
  %v87 = vpack.c.b16 %v86, %v85
  %v105 = vunpack.c.l.b16 %v67
  %v106 = vunpack.c.h.b16 %v67
  %v107 = vunpack.c.l.b16 %v68
  %v108 = vunpack.c.h.b16 %v68
  %v109 = vunpack.c.l.b16 %v69
  %v110 = vunpack.c.h.b16 %v69
  %v111 = vunpack.c.l.b16 %v70
  %v112 = vunpack.c.h.b16 %v70
  %v113 = vunpack.c.l.b16 %v71
  %v114 = vunpack.c.h.b16 %v71
  %v115 = vunpack.c.l.b16 %v72
  %v116 = vunpack.c.h.b16 %v72
  %v117 = vunpack.c.l.b16 %v73
  %v118 = vunpack.c.h.b16 %v73
  %v119 = vunpack.c.l.b16 %v74
  %v120 = vunpack.c.h.b16 %v74
  %v121 = vunpack.c.l.b16 %v75
  %v122 = vunpack.c.h.b16 %v75
  %v123 = vunpack.c.l.b16 %v76
  %v124 = vunpack.c.h.b16 %v76
  %v125 = vunpack.c.l.b16 %v77
  %v126 = vunpack.c.h.b16 %v77
  %v127 = vunpack.c.l.b16 %v78
  %v128 = vunpack.c.h.b16 %v78
  %v129 = vunpack.c.l.b16 %v79
  %v130 = vunpack.c.h.b16 %v79
  %v131 = vunpack.c.l.b16 %v80
  %v132 = vunpack.c.h.b16 %v80
  %v133 = vunpack.c.l.b16 %v81
  %v134 = vunpack.c.h.b16 %v81
  %v135 = vunpack.c.l.b16 %v82
  %v136 = vunpack.c.h.b16 %v82
  %v137 = vpack.c.b16 %v107, %v105
  %v138 = vpack.c.b16 %v108, %v106
  %v139 = vpack.c.b16 %v111, %v109
  %v140 = vpack.c.b16 %v112, %v110
  %v141 = vpack.c.b16 %v115, %v113
  %v142 = vpack.c.b16 %v116, %v114
  %v143 = vpack.c.b16 %v119, %v117
  %v144 = vpack.c.b16 %v120, %v118
  %v145 = vpack.c.b16 %v123, %v121
  %v146 = vpack.c.b16 %v124, %v122
  %v147 = vpack.c.b16 %v127, %v125
  %v148 = vpack.c.b16 %v128, %v126
  %v149 = vpack.c.b16 %v131, %v129
  %v150 = vpack.c.b16 %v132, %v130
  %v151 = vpack.c.b16 %v135, %v133
  %v152 = vpack.c.b16 %v136, %v134
  %169 = vmatprep.subr.bf16.mxu0 %v138
  %170 = vmatpush1.bf16.msra.mxu0 %v137
  %171 = vmatprep.subr.bf16.mxu0 %v140
  %172 = vmatpush1.bf16.msra.mxu0 %v139
  %173 = vmatprep.subr.bf16.mxu0 %v142
  %174 = vmatpush1.bf16.msra.mxu0 %v141
  %175 = vmatprep.subr.bf16.mxu0 %v144
  %176 = vmatpush1.bf16.msra.mxu0 %v143
  %177 = vmatprep.subr.bf16.mxu0 %v146
  %178 = vmatpush1.bf16.msra.mxu0 %v145
  %179 = vmatprep.subr.bf16.mxu0 %v148
  %180 = vmatpush1.bf16.msra.mxu0 %v147
  %181 = vmatprep.subr.bf16.mxu0 %v150
  %182 = vmatpush1.bf16.msra.mxu0 %v149
  %183 = vmatprep.subr.bf16.mxu0 %v152
  %184 = vmatpush1.bf16.msra.mxu0 %v151
  %185 = vmatprep.subr.bf16.mxu0 0
  %186 = vmatpush1.bf16.msra.mxu0 0
  %187 = vmatprep.subr.bf16.mxu0 0
  %188 = vmatpush1.bf16.msra.mxu0 0
  %189 = vmatprep.subr.bf16.mxu0 0
  %190 = vmatpush1.bf16.msra.mxu0 0
  %191 = vmatprep.subr.bf16.mxu0 0
  %192 = vmatpush1.bf16.msra.mxu0 0
  %193 = vmatprep.subr.bf16.mxu0 0
  %194 = vmatpush1.bf16.msra.mxu0 0
  %195 = vmatprep.subr.bf16.mxu0 0
  %196 = vmatpush1.bf16.msra.mxu0 0
  %197 = vmatprep.subr.bf16.mxu0 0
  %198 = vmatpush1.bf16.msra.mxu0 0
  %199 = vmatprep.subr.bf16.mxu0 0
  %200 = vmatpush1.bf16.msra.mxu0 0
  %201 = vmatprep.mubr.bf16.mxu0 0
  %202 = vmatmul.mubr.bf16.gmra.mrb[0].mxu0 %v87
  %v203 = vpop.f32.mrb[0].mxu0
  %v204 = vadd.f32 0.0, %v203
  %v205 = vpop.f32.mrb[0].mxu0
  %v206 = vadd.f32 0.0, %v205
  %v207 = vpop.f32.mrb[0].mxu0
  %v208 = vadd.f32 0.0, %v207
  %v209 = vpop.f32.mrb[0].mxu0
  %v210 = vadd.f32 0.0, %v209
  %211 = vdwg.mxu0
  %v212 = vxor.u32 %v204, 2147483648
  %v213 = vxor.u32 %v208, 2147483648
  %v214 = vmul.f32 %v212, 1.442695
  %v215 = vpow.pop %v214
  %v216 = vmul.f32 %v213, 1.442695
  %v217 = vpow.pop %v216
  %v218 = vadd.f32 %v215, 1.0
  %v219 = vadd.f32 %v217, 1.0
  %v220 = vrcp.pop %v218
  %v221 = vmul.f32 1.0, %v220
  %v222 = vrcp.pop %v219
  %v223 = vmul.f32 1.0, %v222
  %v224 = vmul.f32 %v204, %v221
  %v225 = vmul.f32 %v208, %v223
  %v226 = vmul.f32 %v224, %v206
  %v227 = vmul.f32 %v225, %v210
  %v228 = vld [vmem:[#allocation2] sm:$0xff]
  %v229 = vld [vmem:[#allocation2 + $0x8] sm:$0xff]
  %v230 = vpack.c.bf16 %v227, %v226
  %v231 = vld [vmem:[%s55] sm:$0xf]
  %v232 = vld [vmem:[%s55 + $0x4] sm:$0xf]
  %v233 = vld [vmem:[%s55 + $0x8] sm:$0xf]
  %v234 = vld [vmem:[%s55 + $0xc] sm:$0xf]
  %v235 = vld [vmem:[%s55 + $0x10] sm:$0xf]
  %v236 = vld [vmem:[%s55 + $0x14] sm:$0xf]
  %v237 = vld [vmem:[%s55 + $0x18] sm:$0xf]
  %v238 = vld [vmem:[%s55 + $0x1c] sm:$0xf]
  %v239 = vld [vmem:[%s55 + $0x20] sm:$0xf]
  %v240 = vld [vmem:[%s55 + $0x24] sm:$0xf]
  %v241 = vld [vmem:[%s55 + $0x28] sm:$0xf]
  %v242 = vld [vmem:[%s55 + $0x2c] sm:$0xf]
  %v243 = vld [vmem:[%s55 + $0x30] sm:$0xf]
  %v244 = vld [vmem:[%s55 + $0x34] sm:$0xf]
  %v245 = vld [vmem:[%s55 + $0x38] sm:$0xf]
  %v246 = vld [vmem:[%s55 + $0x3c] sm:$0xf]
  %v263 = vunpack.c.l.b16 %v231
  %v264 = vunpack.c.l.b16 %v232
  %v265 = vunpack.c.l.b16 %v233
  %v266 = vunpack.c.l.b16 %v234
  %v267 = vunpack.c.l.b16 %v235
  %v268 = vunpack.c.l.b16 %v236
  %v269 = vunpack.c.l.b16 %v237
  %v270 = vunpack.c.l.b16 %v238
  %v271 = vunpack.c.l.b16 %v239
  %v272 = vunpack.c.l.b16 %v240
  %v273 = vunpack.c.l.b16 %v241
  %v274 = vunpack.c.l.b16 %v242
  %v275 = vunpack.c.l.b16 %v243
  %v276 = vunpack.c.l.b16 %v244
  %v277 = vunpack.c.l.b16 %v245
  %v278 = vunpack.c.l.b16 %v246
  %v279 = vpack.c.b16 %v264, %v263
  %v280 = vpack.c.b16 %v266, %v265
  %v281 = vpack.c.b16 %v268, %v267
  %v282 = vpack.c.b16 %v270, %v269
  %v283 = vpack.c.b16 %v272, %v271
  %v284 = vpack.c.b16 %v274, %v273
  %v285 = vpack.c.b16 %v276, %v275
  %v286 = vpack.c.b16 %v278, %v277
  %295 = vmatprep.subr.bf16.mxu0 0
  %296 = vmatpush1.bf16.msra.mxu0 %v279
  %297 = vmatprep.subr.bf16.mxu0 0
  %298 = vmatpush1.bf16.msra.mxu0 %v280
  %299 = vmatprep.subr.bf16.mxu0 0
  %300 = vmatpush1.bf16.msra.mxu0 %v281
  %301 = vmatprep.subr.bf16.mxu0 0
  %302 = vmatpush1.bf16.msra.mxu0 %v282
  %303 = vmatprep.subr.bf16.mxu0 0
  %304 = vmatpush1.bf16.msra.mxu0 %v283
  %305 = vmatprep.subr.bf16.mxu0 0
  %306 = vmatpush1.bf16.msra.mxu0 %v284
  %307 = vmatprep.subr.bf16.mxu0 0
  %308 = vmatpush1.bf16.msra.mxu0 %v285
  %309 = vmatprep.subr.bf16.mxu0 0
  %310 = vmatpush1.bf16.msra.mxu0 %v286
  %311 = vmatprep.subr.bf16.mxu0 0
  %312 = vmatpush1.bf16.msra.mxu0 0
  %313 = vmatprep.subr.bf16.mxu0 0
  %314 = vmatpush1.bf16.msra.mxu0 0
  %315 = vmatprep.subr.bf16.mxu0 0
  %316 = vmatpush1.bf16.msra.mxu0 0
  %317 = vmatprep.subr.bf16.mxu0 0
  %318 = vmatpush1.bf16.msra.mxu0 0
  %319 = vmatprep.subr.bf16.mxu0 0
  %320 = vmatpush1.bf16.msra.mxu0 0
  %321 = vmatprep.subr.bf16.mxu0 0
  %322 = vmatpush1.bf16.msra.mxu0 0
  %323 = vmatprep.subr.bf16.mxu0 0
  %324 = vmatpush1.bf16.msra.mxu0 0
  %325 = vmatprep.subr.bf16.mxu0 0
  %326 = vmatpush1.bf16.msra.mxu0 0
  %327 = vmatprep.mubr.bf16.mxu0 0
  %328 = vmatmul.mubr.bf16.gmra.mrb[0].mxu0 %v230
  %v329 = vpop.f32.mrb[0].mxu0
  %v330 = vadd.f32 0.0, %v329
  %v331 = vpop.f32.mrb[0].mxu0
  %v332 = vpop.f32.mrb[0].mxu0
  %v333 = vadd.f32 0.0, %v332
  %v334 = vpop.f32.mrb[0].mxu0
  %335 = vdwg.mxu0
  %v336 = vadd.f32 %v228, %v330
  %v337 = vadd.f32 %v229, %v333
  %338 = vst [vmem:[#allocation2] sm:$0xff] %v336
  %339 = vst [vmem:[#allocation2 + $0x8] sm:$0xff] %v337
  // Predicated region
  $region18: #{forward.1} parent=0 // pred_check
    %p340 = pneg %p59
  $region19: #{forward.1} parent=0 // pred_check_branch
    %342 = sbr.rel (%p340) target = $region21
  $region20: #{forward.1} parent=0 // pred_region
    %v343 = vld [vmem:[#allocation2] sm:$0xff]
    %v344 = vld [vmem:[#allocation2 + $0x8] sm:$0xff]
    %345 = vst [vmem:[%s3] sm:$0xff] %v343
    %346 = vst [vmem:[%s3 + $0x8] sm:$0xff] %v344
  $region21: #{forward.1} parent=0 // pred_fallthru
    _
  // Predicated region
  $region22: #{forward.1} parent=0 // pred_check
    _
  $region23: #{forward.1} parent=0 // pred_check_branch
    %348 = sbr.rel (0) target = $region25
  $region24: #{forward.1} parent=0 // pred_region
    _
  $region25: #{forward.1} parent=0 // pred_fallthru
    _
  // Predicated region
  $region26: #{forward.1} parent=0 // pred_check
    _
  $region27: #{forward.1} parent=0 // pred_check_branch
    %350 = sbr.rel (0) target = $region29
  $region28: #{forward.1} parent=0 // pred_region
    _
  $region29: #{forward.1} parent=0 // pred_fallthru
    _

</llo_original>
